<compile_context>
chip_gen: v7x
topology: tpu7x:2x2x1
jax: 0.10.0
libtpu: 0.0.40
codegen_flags: <defaults>
</compile_context>

<pallas_src>
import functools
import math

import jax
import jax.numpy as jnp
from jax.experimental import pallas as pl
from jax.experimental.pallas import tpu as pltpu


# ---------------------------------------------------------------------------
# Chebyshev polynomials T_m(cos theta) = cos(m theta)  (the module's mlambda)
# ---------------------------------------------------------------------------
def _cos_m_theta(c, m):
    if m == 0:
        return jnp.ones_like(c)
    if m == 1:
        return c
    if m == 2:
        return 2.0 * c * c - 1.0
    if m == 3:
        return (4.0 * c * c - 3.0) * c
    if m == 4:
        c2 = c * c
        return (8.0 * c2 - 8.0) * c2 + 1.0
    if m == 5:
        c2 = c * c
        return ((16.0 * c2 - 20.0) * c2 + 5.0) * c
    raise ValueError(f"m={m} not supported (module defines m in 0..5)")


# ---------------------------------------------------------------------------
# Pallas kernel: K-accumulated GEMM + fused angular-margin epilogue
# ---------------------------------------------------------------------------
def _angle_linear_kernel(x_ref, w_ref, xlen_ref, inv_xlen_ref,
                         cos_ref, phi_ref, acc_ref, *, m, thresholds):
    # x_ref:        [TM, TK]   (bf16 or f32, zero-padded)
    # w_ref:        [TK, TC]   unit-norm weight columns (zero-padded)
    # xlen_ref:     [TM, 1]    f32  ||x_row||        (padded rows = 1.0)
    # inv_xlen_ref: [TM, 1]    f32  1/||x_row||      (padded rows = 1.0)
    # cos_ref/phi_ref: [TM, TC] f32
    # acc_ref:      [TM, TC]   f32 VMEM scratch (logits accumulator over K)
    kk = pl.program_id(2)
    nk = pl.num_programs(2)

    @pl.when(kk == 0)
    def _():
        acc_ref[...] = jnp.zeros_like(acc_ref)

    acc_ref[...] += jnp.dot(x_ref[...], w_ref[...],
                            preferred_element_type=jnp.float32)     # MXU

    @pl.when(kk == nk - 1)
    def _():
        logits = acc_ref[...]                        # x @ w_unit  (f32)
        xlen = xlen_ref[...]                         # [TM, 1]
        inv_xlen = inv_xlen_ref[...]                 # [TM, 1]

        cosn = jnp.clip(logits * inv_xlen, -1.0, 1.0)      # cos_theta
        cm = _cos_m_theta(cosn, m)                          # cos(m*theta)

        # k = floor(m * acos(cosn) / 3.14159265) without acos: acos is monotone
        # decreasing, so k = #{ j in 1..m : cosn <= cos(j*3.14159265/m) }.
        # (-1)^k is the XOR parity of the same (nested) indicators.
        below = [cosn <= t for t in thresholds]
        if below:
            kf = jnp.where(below[0], 1.0, 0.0)
            parity = below[0]
            for b in below[1:]:
                kf = kf + jnp.where(b, 1.0, 0.0)
                parity = jnp.logical_xor(parity, b)
            sign = jnp.where(parity, -1.0, 1.0)
        else:                                        # m == 0
            kf = jnp.zeros_like(cosn)
            sign = jnp.ones_like(cosn)

        phi = sign * cm - 2.0 * kf

        cos_ref[...] = (cosn * xlen).astype(cos_ref.dtype)
        phi_ref[...] = (phi * xlen).astype(phi_ref.dtype)


# ---------------------------------------------------------------------------
# Wrapper: tile selection + pallas_call
# ---------------------------------------------------------------------------
def _round_up(v, mult):
    return ((v + mult - 1) // mult) * mult


def _pick_vmem_limit_bytes():
    """Scoped-VMEM limit with headroom; conservative fallback (v7x per-TC)."""
    phys = None
    try:
        info = pltpu.get_tpu_info()
        for name in ("vmem_capacity_bytes", "vmem_size_bytes", "vmem_capacity"):
            v = getattr(info, name, None)
            if isinstance(v, int) and v > 0:
                phys = v
                break
    except Exception:
        phys = None
    if phys is None:
        phys = 64 * 1024 * 1024
    return max(32 * 1024 * 1024, min((phys * 3) // 4, 96 * 1024 * 1024))


def angle_linear_forward(x, weight, *, m=4, phiflag=True,
                         mxu_dtype=jnp.bfloat16, tile_k=None):
    """x: [B, in_features], weight: [in_features, out_features] (PyTorch layout).

    Returns (cos_theta * |x|, phi_theta * |x|), each [B, out_features] f32.
    """
    if not phiflag:
        # TODO(synk): phiflag=False branch (myphi(theta, m) needs in-kernel acos)
        # has no clean Pallas/Mosaic lowering; only the default phiflag=True path
        # is implemented.
        raise NotImplementedError("AngleLinear phiflag=False path not implemented")

    B, D = x.shape
    Dw, C = weight.shape
    assert D == Dw, (D, Dw)

    x = x.astype(jnp.float32)
    weight = weight.astype(jnp.float32)

    # w.renorm(2,1,1e-5).mul(1e5) followed by the /||ww_col|| normalization is
    # mathematically just unit-norm columns, so fold 1/||w_col|| into the weight.
    col_norm = jnp.sqrt(jnp.sum(weight * weight, axis=0, keepdims=True))  # [1, C]
    w_unit = weight / col_norm                                            # [D, C]

    # Row norms hoisted out of the kernel (f32, from un-padded x).
    xsq = jnp.sum(x * x, axis=1, keepdims=True)                           # [B, 1]
    xlen = jnp.sqrt(xsq)
    inv_xlen = 1.0 / xlen

    in_bytes = 2 if mxu_dtype == jnp.bfloat16 else 4
    vmem_limit = _pick_vmem_limit_bytes()
    vmem_budget = max(8 * 1024 * 1024, vmem_limit - 8 * 1024 * 1024)

    def _ws_bytes(tm, tc, tk):
        # double-buffered inputs + double-buffered f32 outputs + f32 acc scratch
        return (2 * (in_bytes * tm * tk + in_bytes * tk * tc + 8 * tm)
                + 2 * 2 * 4 * tm * tc + 4 * tm * tc)

    # --- batch tile (minimize round_up(B, TM) - B, keep TM a sublane multiple) -
    if B <= 512:
        TM = _round_up(B, 8)
    else:
        tm_cands = [512, 384, 256]
        bps = [(_round_up(B, tm), tm) for tm in tm_cands]
        min_bp = min(bp for bp, _ in bps)
        TM = max(tm for bp, tm in bps if bp == min_bp)
    Bp = _round_up(B, TM)
    gm_est = Bp // TM

    # --- out-feature tile (lane-dense, minimize padding; prefer >=2 blocks when
    #     the batch axis has only one block so both v7x TensorCores get work) ---
    tc_cands = [128, 256, 384, 512]
    cps = [(_round_up(C, tc), tc) for tc in tc_cands]
    min_cp = min(cp for cp, _ in cps)
    tie = [tc for cp, tc in cps if cp == min_cp]
    if gm_est < 2:
        multi = [tc for tc in tie if min_cp // tc >= 2]
        TC = max(multi) if multi else max(tie)
    else:
        TC = max(tie)
    Cp = _round_up(C, TC)

    # --- K (in_features) tile: bound VMEM independently of in_features ---------
    Dp0 = _round_up(D, 128)
    if tile_k is not None:
        TK = min(max(128, _round_up(int(tile_k), 128)), Dp0)
    else:
        TK = Dp0
        while TK > 512 and _ws_bytes(TM, TC, TK) > vmem_budget:
            TK = _round_up(TK // 2, 128)
    # Last-resort shrinks (rarely triggered with the budgets above); never drop
    # the batch tile below 128 rows when the batch allows it.
    tm_floor = min(TM, 128)
    while TM > tm_floor and _ws_bytes(TM, TC, TK) > vmem_budget:
        TM = max(tm_floor, _round_up(TM // 2, 8))
    while TC > 128 and _ws_bytes(TM, TC, TK) > vmem_budget:
        TC -= 128
    Bp = _round_up(B, TM)
    Cp = _round_up(C, TC)
    Dp = _round_up(D, TK)

    gm, gc, nk = Bp // TM, Cp // TC, Dp // TK

    # --- padded / casted operands ----------------------------------------------
    x_p = jnp.pad(x, ((0, Bp - B), (0, Dp - D))).astype(mxu_dtype)
    w_p = jnp.pad(w_unit, ((0, Dp - D), (0, Cp - C))).astype(mxu_dtype)
    xlen_p = jnp.pad(xlen, ((0, Bp - B), (0, 0)), constant_values=1.0)
    invx_p = jnp.pad(inv_xlen, ((0, Bp - B), (0, 0)), constant_values=1.0)

    # --- grid ordering: make the larger operand the resident one ---------------
    batch_outer = (Bp * Dp + gm * Dp * Cp) <= (Dp * Cp + gc * Bp * Dp)
    if batch_outer:
        grid = (gm, gc, nk)
        x_map = lambda i, j, kk: (i, kk)
        w_map = lambda i, j, kk: (kk, j)
        n_map = lambda i, j, kk: (i, 0)
        o_map = lambda i, j, kk: (i, j)
    else:
        grid = (gc, gm, nk)
        x_map = lambda j, i, kk: (i, kk)
        w_map = lambda j, i, kk: (kk, j)
        n_map = lambda j, i, kk: (i, 0)
        o_map = lambda j, i, kk: (i, j)

    thresholds = tuple(math.cos(j * 3.14159265 / m) for j in range(1, m + 1))
    kernel = functools.partial(_angle_linear_kernel, m=m, thresholds=thresholds)

    cost = pl.CostEstimate(
        flops=int(2 * Bp * Dp * Cp + 32 * Bp * Cp),
        bytes_accessed=int(in_bytes * (gm * Dp * Cp + gc * Bp * Dp)
                           + 4 * (2 * Bp + 2 * Bp * Cp)),
        transcendentals=0,
    )

    cos_p, phi_p = pl.pallas_call(
        kernel,
        out_shape=(jax.ShapeDtypeStruct((Bp, Cp), jnp.float32),
                   jax.ShapeDtypeStruct((Bp, Cp), jnp.float32)),
        grid=grid,
        in_specs=[
            pl.BlockSpec((TM, TK), x_map),     # x tile       (bf16/f32)
            pl.BlockSpec((TK, TC), w_map),     # weight tile  (bf16/f32)
            pl.BlockSpec((TM, 1), n_map),      # ||x||
            pl.BlockSpec((TM, 1), n_map),      # 1/||x||
        ],
        out_specs=(
            pl.BlockSpec((TM, TC), o_map),
            pl.BlockSpec((TM, TC), o_map),
        ),
        scratch_shapes=[pltpu.VMEM((TM, TC), jnp.float32)],
        compiler_params=pltpu.CompilerParams(
            dimension_semantics=("parallel", "parallel", "arbitrary"),
            vmem_limit_bytes=int(vmem_limit)),
        cost_estimate=cost,
    )(x_p, w_p, xlen_p, invx_p)

    return cos_p[:B, :C], phi_p[:B, :C]


# ---------------------------------------------------------------------------
# Pure-JAX reference (mirrors the PyTorch forward, incl. acos/floor path)
# ---------------------------------------------------------------------------
def _reference(x, weight, *, m=4):
    x = x.astype(jnp.float32)
    weight = weight.astype(jnp.float32)
    col_norm = jnp.sqrt(jnp.sum(weight * weight, axis=0, keepdims=True))
    scale = jnp.where(col_norm > 1e-5, 1e-5 / (col_norm + 1e-7), 1.0)
    ww = weight * scale * 1e5

    xlen = jnp.sqrt(jnp.sum(x * x, axis=1, keepdims=True))          # [B, 1]
    wlen = jnp.sqrt(jnp.sum(ww * ww, axis=0, keepdims=True))        # [1, C]
    cos_theta = jnp.dot(x, ww, precision=jax.lax.Precision.HIGHEST)
    cos_theta = cos_theta / xlen / wlen
    cos_theta = jnp.clip(cos_theta, -1.0, 1.0)

    cos_m_theta = _cos_m_theta(cos_theta, m)
    theta = jnp.arccos(cos_theta)
    k = jnp.floor(m * theta / 3.14159265)
    sign = jnp.where(jnp.mod(k, 2.0) == 0, 1.0, -1.0)   # (-1)^k, k integer-valued
    phi_theta = sign * cos_m_theta - 2.0 * k

    return cos_theta * xlen, phi_theta * xlen


if __name__ == "__main__":
    key = jax.random.PRNGKey(0)
    kx, kw, kx2, kw2 = jax.random.split(key, 4)

    # --- Config 1: module-scale small shapes: AngleLinear(32, 10, m=4) --------
    B, D, C, m = 4, 32, 10, 4
    x = jax.random.normal(kx, (B, D), dtype=jnp.float32)
    # __init__ does uniform(-1,1).renorm_(2,1,1e-5).mul_(1e5); the forward
    # re-applies the renorm, so a raw uniform(-1,1) weight is equivalent here.
    w = jax.random.uniform(kw, (D, C), dtype=jnp.float32, minval=-1.0, maxval=1.0)

    cos_ref, phi_ref = _reference(x, w, m=m)

    # f32 MXU path: tight check of the fused math.
    cos_f32, phi_f32 = angle_linear_forward(x, w, m=m, mxu_dtype=jnp.float32)
    cos_f32 = jax.block_until_ready(cos_f32)
    phi_f32 = jax.block_until_ready(phi_f32)
    assert cos_f32.shape == (B, C) and phi_f32.shape == (B, C)
    assert jnp.allclose(cos_f32, cos_ref, rtol=1e-3, atol=1e-3), "cos (f32) mismatch"
    assert jnp.allclose(phi_f32, phi_ref, rtol=1e-3, atol=1e-3), "phi (f32) mismatch"

    # Default bf16-MXU path (looser tolerance: bf16 operand rounding, f32 accum).
    cos_bf, phi_bf = angle_linear_forward(x, w, m=m)
    cos_bf = jax.block_until_ready(cos_bf)
    phi_bf = jax.block_until_ready(phi_bf)
    assert jnp.allclose(cos_bf, cos_ref, rtol=5e-2, atol=1e-1), "cos (bf16) mismatch"
    assert jnp.allclose(phi_bf, phi_ref, rtol=5e-2, atol=1e-1), "phi (bf16) mismatch"

    # --- Config 2: exercises multi-tile out-feature axis and the K-accumulator -
    B2, D2, C2 = 48, 200, 300
    x2 = jax.random.normal(kx2, (B2, D2), dtype=jnp.float32)
    w2 = jax.random.uniform(kw2, (D2, C2), dtype=jnp.float32, minval=-1.0, maxval=1.0)
    cos2_ref, phi2_ref = _reference(x2, w2, m=m)
    cos2, phi2 = angle_linear_forward(x2, w2, m=m, tile_k=128)   # force nk=2 path
    cos2 = jax.block_until_ready(cos2)
    phi2 = jax.block_until_ready(phi2)
    assert cos2.shape == (B2, C2) and phi2.shape == (B2, C2)
    assert jnp.allclose(cos2, cos2_ref, rtol=5e-2, atol=1e-1), "cos (tiled) mismatch"
    assert jnp.allclose(phi2, phi2_ref, rtol=5e-2, atol=1e-1), "phi (tiled) mismatch"

    print("KERNEL_OK")
</pallas_src>

<mosaic_0001>
module attributes {stable_mosaic.version = 11 : i64} {
  func.func @_angle_linear_kernel(%arg0: i32, %arg1: i32, %arg2: i32, %arg3: memref<8x128xf32, #tpu.memory_space<vmem>>, %arg4: memref<128x128xf32, #tpu.memory_space<vmem>>, %arg5: memref<8x1xf32, #tpu.memory_space<vmem>>, %arg6: memref<8x1xf32, #tpu.memory_space<vmem>>, %arg7: memref<8x128xf32, #tpu.memory_space<vmem>>, %arg8: memref<8x128xf32, #tpu.memory_space<vmem>>, %arg9: memref<8x128xf32, #tpu.memory_space<vmem>>) attributes {dimension_semantics = [#tpu.dimension_semantics<parallel>, #tpu.dimension_semantics<parallel>, #tpu.dimension_semantics<arbitrary>], iteration_bounds = array<i64: 1, 1, 1>, scalar_prefetch = 0 : i64, scratch_operands = 1 : i64, tpu.core_type = #tpu.core_type<tc>, window_params = [{transform_indices = @transform_0, window_bounds = array<i64: 8, 128>}, {transform_indices = @transform_1, window_bounds = array<i64: 128, 128>}, {transform_indices = @transform_2, window_bounds = array<i64: 8, 1>}, {transform_indices = @transform_3, window_bounds = array<i64: 8, 1>}, {transform_indices = @transform_4, window_bounds = array<i64: 8, 128>}, {transform_indices = @transform_5, window_bounds = array<i64: 8, 128>}]} {
    %c0_i32 = arith.constant 0 : i32
    %0 = arith.cmpi eq, %arg2, %c0_i32 : i32
    %1 = arith.extui %0 : i1 to i32
    %c0_i32_0 = arith.constant 0 : i32
    %2 = arith.cmpi ne, %1, %c0_i32_0 : i32
    scf.if %2 {
      %cst_10 = arith.constant 0.000000e+00 : f32
      %12 = vector.broadcast %cst_10 : f32 to vector<8x128xf32>
      %c0_11 = arith.constant 0 : index
      %c0_12 = arith.constant 0 : index
      %13 = vector.load %arg9[%c0_11, %c0_12] : memref<8x128xf32, #tpu.memory_space<vmem>>, vector<8x128xf32>
      tpu.vector_store %arg9[%c0_11, %c0_12], %12 {strides = array<i32>} : memref<8x128xf32, #tpu.memory_space<vmem>>, vector<8x128xf32>,
    } else {
    }
    %c0 = arith.constant 0 : index
    %c0_1 = arith.constant 0 : index
    %3 = vector.load %arg9[%c0, %c0_1] : memref<8x128xf32, #tpu.memory_space<vmem>>, vector<8x128xf32>
    %c0_2 = arith.constant 0 : index
    %c0_3 = arith.constant 0 : index
    %4 = vector.load %arg3[%c0_2, %c0_3] : memref<8x128xf32, #tpu.memory_space<vmem>>, vector<8x128xf32>
    %c0_4 = arith.constant 0 : index
    %c0_5 = arith.constant 0 : index
    %5 = vector.load %arg4[%c0_4, %c0_5] : memref<128x128xf32, #tpu.memory_space<vmem>>, vector<128x128xf32>
    %cst = arith.constant dense<0.000000e+00> : vector<8x128xf32>
    %6 = tpu.matmul %4, %5, %cst {dimension_numbers = #tpu.dot_dimension_numbers<[1], [0], [0], [1], [0, 0, 1, 1], [], []>} : vector<8x128xf32>, vector<128x128xf32>, vector<8x128xf32> -> vector<8x128xf32>
    %7 = arith.addf %3, %6 : vector<8x128xf32>
    %c0_6 = arith.constant 0 : index
    %c0_7 = arith.constant 0 : index
    %8 = vector.load %arg9[%c0_6, %c0_7] : memref<8x128xf32, #tpu.memory_space<vmem>>, vector<8x128xf32>
    tpu.vector_store %arg9[%c0_6, %c0_7], %7 {strides = array<i32>} : memref<8x128xf32, #tpu.memory_space<vmem>>, vector<8x128xf32>,
    %c0_i32_8 = arith.constant 0 : i32
    %9 = arith.cmpi eq, %arg2, %c0_i32_8 : i32
    %10 = arith.extui %9 : i1 to i32
    %c0_i32_9 = arith.constant 0 : i32
    %11 = arith.cmpi ne, %10, %c0_i32_9 : i32
    scf.if %11 {
      %c0_10 = arith.constant 0 : index
      %c0_11 = arith.constant 0 : index
      %12 = vector.load %arg9[%c0_10, %c0_11] : memref<8x128xf32, #tpu.memory_space<vmem>>, vector<8x128xf32>
      %c0_12 = arith.constant 0 : index
      %c0_13 = arith.constant 0 : index
      %13 = vector.load %arg5[%c0_12, %c0_13] : memref<8x1xf32, #tpu.memory_space<vmem>>, vector<8x1xf32>
      %c0_14 = arith.constant 0 : index
      %c0_15 = arith.constant 0 : index
      %14 = vector.load %arg6[%c0_14, %c0_15] : memref<8x1xf32, #tpu.memory_space<vmem>>, vector<8x1xf32>
      %15 = vector.broadcast %14 : vector<8x1xf32> to vector<8x128xf32>
      %16 = arith.mulf %12, %15 : vector<8x128xf32>
      %cst_16 = arith.constant -1.000000e+00 : f32
      %cst_17 = arith.constant 1.000000e+00 : f32
      %17 = vector.broadcast %cst_16 : f32 to vector<8x128xf32>
      %18 = arith.maximumf %17, %16 : vector<8x128xf32>
      %19 = vector.broadcast %cst_17 : f32 to vector<8x128xf32>
      %20 = arith.minimumf %19, %18 : vector<8x128xf32>
      %21 = arith.mulf %20, %20 : vector<8x128xf32>
      %cst_18 = arith.constant 8.000000e+00 : f32
      %22 = vector.broadcast %cst_18 : f32 to vector<8x128xf32>
      %23 = arith.mulf %22, %21 : vector<8x128xf32>
      %cst_19 = arith.constant 8.000000e+00 : f32
      %24 = vector.broadcast %cst_19 : f32 to vector<8x128xf32>
      %25 = arith.subf %23, %24 : vector<8x128xf32>
      %26 = arith.mulf %25, %21 : vector<8x128xf32>
      %cst_20 = arith.constant 1.000000e+00 : f32
      %27 = vector.broadcast %cst_20 : f32 to vector<8x128xf32>
      %28 = arith.addf %26, %27 : vector<8x128xf32>
      %cst_21 = arith.constant 0.707106769 : f32
      %29 = vector.broadcast %cst_21 : f32 to vector<8x128xf32>
      %30 = arith.cmpf ole, %20, %29 : vector<8x128xf32>
      %cst_22 = arith.constant 1.79489656E-9 : f32
      %31 = vector.broadcast %cst_22 : f32 to vector<8x128xf32>
      %32 = arith.cmpf ole, %20, %31 : vector<8x128xf32>
      %cst_23 = arith.constant -0.707106769 : f32
      %33 = vector.broadcast %cst_23 : f32 to vector<8x128xf32>
      %34 = arith.cmpf ole, %20, %33 : vector<8x128xf32>
      %cst_24 = arith.constant -1.000000e+00 : f32
      %35 = vector.broadcast %cst_24 : f32 to vector<8x128xf32>
      %36 = arith.cmpf ole, %20, %35 : vector<8x128xf32>
      %cst_25 = arith.constant 1.000000e+00 : f32
      %cst_26 = arith.constant 0.000000e+00 : f32
      %37 = vector.broadcast %cst_25 : f32 to vector<8x128xf32>
      %38 = vector.broadcast %cst_26 : f32 to vector<8x128xf32>
      %39 = arith.select %30, %37, %38 : vector<8x128xi1>, vector<8x128xf32>
      %cst_27 = arith.constant 1.000000e+00 : f32
      %cst_28 = arith.constant 0.000000e+00 : f32
      %40 = vector.broadcast %cst_27 : f32 to vector<8x128xf32>
      %41 = vector.broadcast %cst_28 : f32 to vector<8x128xf32>
      %42 = arith.select %32, %40, %41 : vector<8x128xi1>, vector<8x128xf32>
      %43 = arith.addf %39, %42 : vector<8x128xf32>
      %44 = arith.xori %30, %32 : vector<8x128xi1>
      %cst_29 = arith.constant 1.000000e+00 : f32
      %cst_30 = arith.constant 0.000000e+00 : f32
      %45 = vector.broadcast %cst_29 : f32 to vector<8x128xf32>
      %46 = vector.broadcast %cst_30 : f32 to vector<8x128xf32>
      %47 = arith.select %34, %45, %46 : vector<8x128xi1>, vector<8x128xf32>
      %48 = arith.addf %43, %47 : vector<8x128xf32>
      %49 = arith.xori %44, %34 : vector<8x128xi1>
      %cst_31 = arith.constant 1.000000e+00 : f32
      %cst_32 = arith.constant 0.000000e+00 : f32
      %50 = vector.broadcast %cst_31 : f32 to vector<8x128xf32>
      %51 = vector.broadcast %cst_32 : f32 to vector<8x128xf32>
      %52 = arith.select %36, %50, %51 : vector<8x128xi1>, vector<8x128xf32>
      %53 = arith.addf %48, %52 : vector<8x128xf32>
      %54 = arith.xori %49, %36 : vector<8x128xi1>
      %cst_33 = arith.constant -1.000000e+00 : f32
      %cst_34 = arith.constant 1.000000e+00 : f32
      %55 = vector.broadcast %cst_33 : f32 to vector<8x128xf32>
      %56 = vector.broadcast %cst_34 : f32 to vector<8x128xf32>
      %57 = arith.select %54, %55, %56 : vector<8x128xi1>, vector<8x128xf32>
      %58 = arith.mulf %57, %28 : vector<8x128xf32>
      %cst_35 = arith.constant 2.000000e+00 : f32
      %59 = vector.broadcast %cst_35 : f32 to vector<8x128xf32>
      %60 = arith.mulf %59, %53 : vector<8x128xf32>
      %61 = arith.subf %58, %60 : vector<8x128xf32>
      %62 = vector.broadcast %13 : vector<8x1xf32> to vector<8x128xf32>
      %63 = arith.mulf %20, %62 : vector<8x128xf32>
      %c0_36 = arith.constant 0 : index
      %c0_37 = arith.constant 0 : index
      %64 = vector.load %arg7[%c0_36, %c0_37] : memref<8x128xf32, #tpu.memory_space<vmem>>, vector<8x128xf32>
      tpu.vector_store %arg7[%c0_36, %c0_37], %63 {strides = array<i32>} : memref<8x128xf32, #tpu.memory_space<vmem>>, vector<8x128xf32>,
      %65 = vector.broadcast %13 : vector<8x1xf32> to vector<8x128xf32>
      %66 = arith.mulf %61, %65 : vector<8x128xf32>
      %c0_38 = arith.constant 0 : index
      %c0_39 = arith.constant 0 : index
      %67 = vector.load %arg8[%c0_38, %c0_39] : memref<8x128xf32, #tpu.memory_space<vmem>>, vector<8x128xf32>
      tpu.vector_store %arg8[%c0_38, %c0_39], %66 {strides = array<i32>} : memref<8x128xf32, #tpu.memory_space<vmem>>, vector<8x128xf32>,
    } else {
    }
    return
  }
  func.func @transform_0(%arg0: i32, %arg1: i32, %arg2: i32) -> (i32, i32) {
    %c0_i32 = arith.constant 0 : i32
    return %arg0, %arg2 : i32, i32
  }
  func.func @transform_1(%arg0: i32, %arg1: i32, %arg2: i32) -> (i32, i32) {
    %c0_i32 = arith.constant 0 : i32
    return %arg2, %arg1 : i32, i32
  }
  func.func @transform_2(%arg0: i32, %arg1: i32, %arg2: i32) -> (i32, i32) {
    %c0_i32 = arith.constant 0 : i32
    %c0_i32_0 = arith.constant 0 : i32
    return %arg0, %c0_i32 : i32, i32
  }
  func.func @transform_3(%arg0: i32, %arg1: i32, %arg2: i32) -> (i32, i32) {
    %c0_i32 = arith.constant 0 : i32
    %c0_i32_0 = arith.constant 0 : i32
    return %arg0, %c0_i32 : i32, i32
  }
  func.func @transform_4(%arg0: i32, %arg1: i32, %arg2: i32) -> (i32, i32) {
    %c0_i32 = arith.constant 0 : i32
    return %arg0, %arg1 : i32, i32
  }
  func.func @transform_5(%arg0: i32, %arg1: i32, %arg2: i32) -> (i32, i32) {
    %c0_i32 = arith.constant 0 : i32
    return %arg0, %arg1 : i32, i32
  }
}

</mosaic_0001>

<llo_original>
// kernel: tpu_custom_call.1
$region0: #{tpu_custom_call.1}
  #allocation0 [shape = 'u32[]', space=smem, size = 0x4, offset = 0x4, fixed_abs, tag = 'smem constant byte address 0x4 - core index']
  #allocation1 [shape = 'u32[144,128]{1,0:T(1,128)}', space=vmem, size = 0x12000, scoped, tag = 'internal scratch']
  #allocation2 [shape = 'f32[8,128]{1,0:T(8,128)}', space=vmem, size = 0x1000, scoped, tag = 'scratch operand']
  %s0 = inlined_call_operand.vmem [shape: f32[8,128], index: 0, kind: input, shape index: {}]
  %s1 = inlined_call_operand.hbm [shape: f32[128,128], index: 1, kind: input, shape index: {}]
  %s2 = inlined_call_operand.vmem [shape: f32[8,1], index: 2, kind: input, shape index: {}]
  %s3 = inlined_call_operand.vmem [shape: f32[8,1], index: 3, kind: input, shape index: {}]
  %s4 = inlined_call_operand.hbm [shape: f32[8,128], index: 4, kind: output, shape index: {0}]
  %s5 = inlined_call_operand.hbm [shape: f32[8,128], index: 5, kind: output, shape index: {1}]
  %6 = xla_tuple %s4, %s5
  %s7 = sld [smem:[#allocation0]]
  $region46: #{tpu_custom_call.1} parent=0
    _
  %s9 = ssub.s32 1, %s7
  %s10 = scalar_select 0, %s9, %s7
  $region1: #{tpu_custom_call.1} parent=0
    #allocation3 [shape = 'u8[65536]{0}', space=vmem, size = 0x10000, scoped, tag = 'input window, operand 1, single buffered']
    #allocation4 [shape = 's32[1]{0}', space=sflag, size = 0x4, scoped, tag = 'scoped memory for tpu_custom_call.1']
    #allocation5 [shape = 's32[1]{0}', space=sflag, size = 0x4, scoped, tag = 'scoped memory for tpu_custom_call.1']
    #allocation6 [shape = 'u8[4096]{0}', space=vmem, size = 0x1000, scoped, tag = 'output window, operand 0, single buffered']
    #allocation7 [shape = 'u8[4096]{0}', space=vmem, size = 0x1000, scoped, tag = 'output window, operand 1, single buffered']
    #allocation8 [shape = 's32[1]{0}', space=sflag, size = 0x4, scoped, tag = 'scoped memory for tpu_custom_call.1']
    %11 = vsyncpa [#allocation4], 0
    %12 = vsyncpa [#allocation5], 0
    %13 = vsyncpa [#allocation8], 0
    // Predicated region
    $region2: #{tpu_custom_call.1} parent=1 // pred_check
      _
    $region3: #{tpu_custom_call.1} parent=1 // pred_check_branch
      %15 = sbr.rel (0) target = $region5
    $region4: #{tpu_custom_call.1} parent=1 // pred_region
      _
    $region5: #{tpu_custom_call.1} parent=1 // pred_fallthru
      _
    // Predicated region
    $region6: #{tpu_custom_call.1} parent=1 // pred_check
      _
    $region7: #{tpu_custom_call.1} parent=1 // pred_check_branch
      %17 = sbr.rel (0) target = $region9
    $region8: #{tpu_custom_call.1} parent=1 // pred_region
      %s19 = ssub.s32 2048, 2048
      %20 = vsyncadd [#allocation4], %s19
      %s21 = sshll.u32 [#allocation3], 4
      %s22 = int_to_ptr.vmem [resolvable:$true] %s21
      %27 = dma.hbm_to_vmem [thread:$0]  %s1, 2048, %s22, [#allocation4], 128, 128, 8
    $region9: #{tpu_custom_call.1} parent=1 // pred_fallthru
      _
    // Predicated region
    $region10: #{tpu_custom_call.1} parent=1 // pred_check
      _
    $region11: #{tpu_custom_call.1} parent=1 // pred_check_branch
      %29 = sbr.rel (0) target = $region13
    $region12: #{tpu_custom_call.1} parent=1 // pred_region
      _
    $region13: #{tpu_custom_call.1} parent=1 // pred_fallthru
      _
    // Predicated region
    $region14: #{tpu_custom_call.1} parent=1 // pred_check
      _
    $region15: #{tpu_custom_call.1} parent=1 // pred_check_branch
      %31 = sbr.rel (0) target = $region17
    $region16: #{tpu_custom_call.1} parent=1 // pred_region
      _
    $region17: #{tpu_custom_call.1} parent=1 // pred_fallthru
      _
    // Predicated region
    $region18: #{tpu_custom_call.1} parent=1 // pred_check
      _
    $region19: #{tpu_custom_call.1} parent=1 // pred_check_branch
      %33 = sbr.rel (0) target = $region21
    $region20: #{tpu_custom_call.1} parent=1 // pred_region
      %34 = dma.done [#allocation4], 2048
    $region21: #{tpu_custom_call.1} parent=1 // pred_fallthru
      _
    %p35 = scmp.eq.s32.totalorder 0, 0
    // Predicated region
    $region22: #{tpu_custom_call.1} parent=1 // pred_check
      %p36 = pneg %p35
    $region23: #{tpu_custom_call.1} parent=1 // pred_check_branch
      %38 = sbr.rel (%p36) target = $region25
    $region24: #{tpu_custom_call.1} parent=1 // pred_region
      %39 = vst [vmem:[#allocation2] sm:$0xff] 0.0
    $region25: #{tpu_custom_call.1} parent=1 // pred_fallthru
      _
    %v40 = vld [vmem:[#allocation2] sm:$0xff]
    %v41 = vld [vmem:[%s0] sm:$0xff]
    %v42 = vld [vmem:[#allocation3] sm:$0xff]
    %v43 = vld [vmem:[#allocation3 + $0x8] sm:$0xff]
    %v44 = vld [vmem:[#allocation3 + $0x10] sm:$0xff]
    %v45 = vld [vmem:[#allocation3 + $0x18] sm:$0xff]
    %v46 = vld [vmem:[#allocation3 + $0x20] sm:$0xff]
    %v47 = vld [vmem:[#allocation3 + $0x28] sm:$0xff]
    %v48 = vld [vmem:[#allocation3 + $0x30] sm:$0xff]
    %v49 = vld [vmem:[#allocation3 + $0x38] sm:$0xff]
    %v50 = vld [vmem:[#allocation3 + $0x40] sm:$0xff]
    %v51 = vld [vmem:[#allocation3 + $0x48] sm:$0xff]
    %v52 = vld [vmem:[#allocation3 + $0x50] sm:$0xff]
    %v53 = vld [vmem:[#allocation3 + $0x58] sm:$0xff]
    %v54 = vld [vmem:[#allocation3 + $0x60] sm:$0xff]
    %v55 = vld [vmem:[#allocation3 + $0x68] sm:$0xff]
    %v56 = vld [vmem:[#allocation3 + $0x70] sm:$0xff]
    %v57 = vld [vmem:[#allocation3 + $0x78] sm:$0xff]
    %58 = vmatprep.subr.mxu0 0.0
    %59 = vmatpush1.msra.mxu0 %v42
    %60 = vmatprep.subr.mxu0 0.0
    %61 = vmatpush1.msra.mxu0 %v43
    %62 = vmatprep.subr.mxu0 0.0
    %63 = vmatpush1.msra.mxu0 %v44
    %64 = vmatprep.subr.mxu0 0.0
    %65 = vmatpush1.msra.mxu0 %v45
    %66 = vmatprep.subr.mxu0 0.0
    %67 = vmatpush1.msra.mxu0 %v46
    %68 = vmatprep.subr.mxu0 0.0
    %69 = vmatpush1.msra.mxu0 %v47
    %70 = vmatprep.subr.mxu0 0.0
    %71 = vmatpush1.msra.mxu0 %v48
    %72 = vmatprep.subr.mxu0 0.0
    %73 = vmatpush1.msra.mxu0 %v49
    %74 = vmatprep.subr.mxu0 0.0
    %75 = vmatpush1.msra.mxu0 %v50
    %76 = vmatprep.subr.mxu0 0.0
    %77 = vmatpush1.msra.mxu0 %v51
    %78 = vmatprep.subr.mxu0 0.0
    %79 = vmatpush1.msra.mxu0 %v52
    %80 = vmatprep.subr.mxu0 0.0
    %81 = vmatpush1.msra.mxu0 %v53
    %82 = vmatprep.subr.mxu0 0.0
    %83 = vmatpush1.msra.mxu0 %v54
    %84 = vmatprep.subr.mxu0 0.0
    %85 = vmatpush1.msra.mxu0 %v55
    %86 = vmatprep.subr.mxu0 0.0
    %87 = vmatpush1.msra.mxu0 %v56
    %88 = vmatprep.subr.mxu0 0.0
    %89 = vmatpush1.msra.mxu0 %v57
    %90 = vmatprep.subr.mxu0 0.0
    %91 = vmatpush1.msra.mxu0 0.0
    %92 = vmatprep.subr.mxu0 0.0
    %93 = vmatpush1.msra.mxu0 0.0
    %94 = vmatprep.subr.mxu0 0.0
    %95 = vmatpush1.msra.mxu0 0.0
    %96 = vmatprep.subr.mxu0 0.0
    %97 = vmatpush1.msra.mxu0 0.0
    %98 = vmatprep.subr.mxu0 0.0
    %99 = vmatpush1.msra.mxu0 0.0
    %100 = vmatprep.subr.mxu0 0.0
    %101 = vmatpush1.msra.mxu0 0.0
    %102 = vmatprep.subr.mxu0 0.0
    %103 = vmatpush1.msra.mxu0 0.0
    %104 = vmatprep.subr.mxu0 0.0
    %105 = vmatpush1.msra.mxu0 0.0
    %106 = vmatprep.subr.mxu0 0.0
    %107 = vmatpush1.msra.mxu0 0.0
    %108 = vmatprep.subr.mxu0 0.0
    %109 = vmatpush1.msra.mxu0 0.0
    %110 = vmatprep.subr.mxu0 0.0
    %111 = vmatpush1.msra.mxu0 0.0
    %112 = vmatprep.subr.mxu0 0.0
    %113 = vmatpush1.msra.mxu0 0.0
    %114 = vmatprep.subr.mxu0 0.0
    %115 = vmatpush1.msra.mxu0 0.0
    %116 = vmatprep.subr.mxu0 0.0
    %117 = vmatpush1.msra.mxu0 0.0
    %118 = vmatprep.subr.mxu0 0.0
    %119 = vmatpush1.msra.mxu0 0.0
    %120 = vmatprep.subr.mxu0 0.0
    %121 = vmatpush1.msra.mxu0 0.0
    %122 = vmatprep.mubr.f32.mxu0 0.0
    %123 = vmatmul.mubr.f32.gmra.mrb[0].mxu0 %v41
    %v124 = vpop.f32.mrb[0].mxu0
    %v125 = vadd.f32 0.0, %v124
    %v126 = vpop.f32.mrb[0].mxu0
    %127 = vdwg.mxu0
    %v128 = vadd.f32 %v40, %v125
    %129 = vst [vmem:[#allocation2] sm:$0xff] %v128
    // Predicated region
    $region26: #{tpu_custom_call.1} parent=1 // pred_check
      %p130 = pneg %p35
    $region27: #{tpu_custom_call.1} parent=1 // pred_check_branch
      %132 = sbr.rel (%p130) target = $region29
    $region28: #{tpu_custom_call.1} parent=1 // pred_region
      %v133 = vld [vmem:[#allocation2] sm:$0xff]
      %v134 = vld [vmem:[%s2] sm:$0xff]
      %v135 = vld [vmem:[%s3] sm:$0xff]
      %137 = vset.pattern.permute.xlu0 0
      %138 = vperm.xlu0 %137, %v135
      %v139 = vpop.permute.xlu0 %138
      %v141 = vmul.f32 %v133, %v139
      %v142 = vmax.f32 %v141, -1.0
      %v143 = vmin.f32 %v142, 1.0
      %v144 = vmul.f32 %v143, %v143
      %v145 = vmul.f32 %v144, 8.0
      %v146 = vsub.f32 %v145, 8.0
      %v147 = vmul.f32 %v146, %v144
      %v148 = vadd.f32 %v147, 1.0
      %vm149 = vcmp.le.f32.partialorder %v143, 0.70710677
      %vm150 = vcmp.le.f32.partialorder %v143, 1.7948966e-09
      %vm151 = vcmp.le.f32.partialorder %v143, -0.70710677
      %vm152 = vcmp.le.f32.partialorder %v143, -1.0
      %v153 = vsel %vm149, 1.0, 0.0
      %v154 = vsel %vm150, 1.0, 0.0
      %v155 = vadd.f32 %v153, %v154
      %vm156 = vmxor %vm149, %vm150
      %v157 = vsel %vm151, 1.0, 0.0
      %v158 = vadd.f32 %v155, %v157
      %vm159 = vmxor %vm156, %vm151
      %v160 = vsel %vm152, 1.0, 0.0
      %v161 = vadd.f32 %v158, %v160
      %vm162 = vmxor %vm159, %vm152
      %v163 = vsel %vm162, -1.0, 1.0
      %v164 = vmul.f32 %v163, %v148
      %v165 = vmul.f32 %v161, 2.0
      %v166 = vsub.f32 %v164, %v165
      %168 = vset.pattern.permute.xlu0 0
      %169 = vperm.xlu0 %168, %v134
      %v170 = vpop.permute.xlu0 %169
      %v172 = vmul.f32 %v143, %v170
      %173 = vst [vmem:[#allocation6] sm:$0xff] %v172
      %v174 = vmul.f32 %v166, %v170
      %175 = vst [vmem:[#allocation7] sm:$0xff] %v174
    $region29: #{tpu_custom_call.1} parent=1 // pred_fallthru
      _
    // Predicated region
    $region30: #{tpu_custom_call.1} parent=1 // pred_check
      _
    $region31: #{tpu_custom_call.1} parent=1 // pred_check_branch
      %177 = sbr.rel (0) target = $region33
    $region32: #{tpu_custom_call.1} parent=1 // pred_region
      %s179 = ssub.s32 128, 128
      %180 = vsyncadd [#allocation5], %s179
      %s182 = sshll.u32 [#allocation6], 4
      %s183 = int_to_ptr.vmem [resolvable:$true] %s182
      %185 = dma.vmem_to_hbm [thread:$0]  %s183, 128, %s4, [#allocation5]
    $region33: #{tpu_custom_call.1} parent=1 // pred_fallthru
      _
    // Predicated region
    $region34: #{tpu_custom_call.1} parent=1 // pred_check
      _
    $region35: #{tpu_custom_call.1} parent=1 // pred_check_branch
      %187 = sbr.rel (0) target = $region37
    $region36: #{tpu_custom_call.1} parent=1 // pred_region
      %s189 = ssub.s32 128, 128
      %190 = vsyncadd [#allocation8], %s189
      %s192 = sshll.u32 [#allocation7], 4
      %s193 = int_to_ptr.vmem [resolvable:$true] %s192
      %195 = dma.vmem_to_hbm [thread:$0]  %s193, 128, %s5, [#allocation8]
    $region37: #{tpu_custom_call.1} parent=1 // pred_fallthru
      _
    // Predicated region
    $region38: #{tpu_custom_call.1} parent=1 // pred_check
      _
    $region39: #{tpu_custom_call.1} parent=1 // pred_check_branch
      %197 = sbr.rel (0) target = $region41
    $region40: #{tpu_custom_call.1} parent=1 // pred_region
      %198 = dma.done [#allocation5], 128
    $region41: #{tpu_custom_call.1} parent=1 // pred_fallthru
      _
    // Predicated region
    $region42: #{tpu_custom_call.1} parent=1 // pred_check
      _
    $region43: #{tpu_custom_call.1} parent=1 // pred_check_branch
      %200 = sbr.rel (0) target = $region45
    $region44: #{tpu_custom_call.1} parent=1 // pred_region
      %201 = dma.done [#allocation8], 128
    $region45: #{tpu_custom_call.1} parent=1 // pred_fallthru
      _
    %202 = vsyncpa [#allocation4], 1
    %203 = vsyncpa [#allocation5], 1
    %204 = vsyncpa [#allocation8], 1

</llo_original>
